<compile_context>
chip_gen: v7x
topology: tpu7x:2x2x1
jax: 0.10.0
libtpu: 0.0.40
codegen_flags: <defaults>
</compile_context>

<pallas_src>
import functools

import jax
import jax.numpy as jnp
from jax.experimental import pallas as pl
from jax.experimental.pallas import tpu as pltpu


def _label_smoothing_kernel(pred_ref, tgt_ref, out_ref, *,
                            smoothing, classes, n_rows, tile_rows):
    i = pl.program_id(0)

    sv = smoothing / (classes - 1)          # off-target probability
    conf = 1.0 - smoothing                  # target probability

    x = pred_ref[...].astype(jnp.float32)   # (TB, C)
    tgt = tgt_ref[...]                      # (TB, 1) int32

    # row_loss = logsumexp_row(x) - sum_c(true_dist_c * x), sum_c(true_dist)=1.
    m = jnp.max(x, axis=-1, keepdims=True)                          # (TB, 1)
    e = jnp.exp(x - m)                                              # (TB, C), in (0,1]

    col = jax.lax.broadcasted_iota(jnp.int32, x.shape, 1)
    w = jnp.where(col == tgt, conf, sv)                             # true_dist (TB, C)
    wx = w * x

    if classes % 128 == 0:
        # Lane reductions on the MXU (frees VALU slots where compute-bound:
        # v7x always, v6e with bf16 inputs). Safe: K is lane-aligned.
        ones_c = jnp.ones((classes, 1), jnp.float32)
        se = jnp.dot(e, ones_c, preferred_element_type=jnp.float32)   # (TB, 1)
        ws = jnp.dot(wx, ones_c, preferred_element_type=jnp.float32)  # (TB, 1)
    else:
        se = jnp.sum(e, axis=-1, keepdims=True)
        ws = jnp.sum(wx, axis=-1, keepdims=True)

    row_loss = m + jnp.log(se) - ws                                 # (TB, 1)

    # Mask rows past the true batch size (ragged last tile reads padded garbage).
    # NOTE: keep this a select (jnp.where), NOT a multiply -- garbage rows may
    # hold NaN/Inf and a multiply-by-0 mask would propagate NaN into the sum.
    row = jax.lax.broadcasted_iota(jnp.int32, row_loss.shape, 0) + i * tile_rows
    row_loss = jnp.where(row < n_rows, row_loss, 0.0)

    partial = jnp.sum(row_loss)                                     # scalar partial

    # Splat the chunk partial across its (8,128) block (cheap full store, no
    # iota/compare/select). Wrapper reads element [0,0] of each block.
    out_ref[...] = jnp.full((8, 128), partial, jnp.float32)


def _round_down(x, m):
    return (x // m) * m


def _vmem_capacity_bytes():
    try:
        return int(pltpu.get_tpu_info().vmem_capacity_bytes)
    except Exception:
        return 128 * 1024 * 1024   # v5e/v6e default if query unavailable


def _bytes_per_row(c, itemsize):
    # 2x double-buffered input stream + ~6 live f32 (TB, C) temporaries
    # (x_f32, e, col iota, w, wx, spill headroom) + double-buffered int32 target
    # column lane-padded to 128 lanes (512 B/row/buffer).
    return c * (2 * itemsize + 6 * 4) + 2 * 128 * 4


def _pick_tile_rows(n, c, itemsize):
    """Largest row tile whose working set fits a per-chip VMEM budget, with at
    least 2 chunks when N >= 16 so both v7x TensorCores get work."""
    vmem_cap = _vmem_capacity_bytes()
    budget = 16 * 1024 * 1024 if vmem_cap <= 64 * 1024 * 1024 else 32 * 1024 * 1024
    rows = max(8, budget // max(_bytes_per_row(c, itemsize), 1))
    rows = _round_down(rows, 8)
    rows = min(rows, 4096)                        # per-step overhead already amortized
    if n >= 16:
        rows = min(rows, max(8, _round_down(n // 2, 8)))   # guarantee >= 2 chunks
    elif n >= 8:
        rows = min(rows, _round_down(n, 8))
    else:
        rows = n                                  # block equals full array dim
    return max(rows, 1)


def label_smoothing_loss(pred, target, *, classes, smoothing=0.1, tile_rows=None):
    """pred: (N, C) float logits (f32 or bf16); target: (N,) int labels.
    Returns scalar f32 loss identical to the PyTorch module's weight=None path."""
    N, C = pred.shape
    assert C == classes
    assert classes >= 2, "smoothing/(classes-1) requires classes >= 2"
    assert 0.0 <= smoothing < 1.0

    itemsize = jnp.dtype(pred.dtype).itemsize
    if tile_rows is None:
        tile_rows = _pick_tile_rows(N, C, itemsize)
    else:
        tile_rows = int(tile_rows)
        if tile_rows >= N:
            tile_rows = N                          # single full-extent block is legal
        else:
            tile_rows = max(8, _round_down(tile_rows, 8))   # Mosaic needs x8 sublanes
    num_chunks = int(pl.cdiv(N, tile_rows))

    tgt2d = target.astype(jnp.int32).reshape(N, 1)

    kernel = functools.partial(
        _label_smoothing_kernel,
        smoothing=float(smoothing),
        classes=int(classes),
        n_rows=int(N),
        tile_rows=tile_rows,
    )

    cost = pl.CostEstimate(
        flops=8 * N * C,
        transcendentals=N * C + N,                       # exp per element + log per row
        bytes_accessed=N * C * itemsize + N * 4 + num_chunks * 8 * 128 * 4,
    )

    # Only raise the scoped-VMEM limit when the chosen tiling actually needs it;
    # cap below physical headroom (v7x has 64 MiB VMEM, v5e/v6e 128 MiB).
    est_vmem = tile_rows * _bytes_per_row(C, itemsize)
    vmem_cap = _vmem_capacity_bytes()
    limit_cap = 40 * 1024 * 1024 if vmem_cap <= 64 * 1024 * 1024 else 64 * 1024 * 1024
    vmem_limit = (min(2 * est_vmem, limit_cap)
                  if est_vmem > 12 * 1024 * 1024 else None)

    out = pl.pallas_call(
        kernel,
        out_shape=jax.ShapeDtypeStruct((num_chunks * 8, 128), jnp.float32),
        grid_spec=pltpu.PrefetchScalarGridSpec(
            num_scalar_prefetch=0,
            grid=(num_chunks,),
            in_specs=[
                pl.BlockSpec((tile_rows, C), lambda i: (i, 0)),
                pl.BlockSpec((tile_rows, 1), lambda i: (i, 0)),
            ],
            out_specs=pl.BlockSpec((8, 128), lambda i: (i, 0)),
        ),
        compiler_params=pltpu.CompilerParams(
            dimension_semantics=("parallel",),   # independent per-chunk partials -> megacore OK
            vmem_limit_bytes=vmem_limit,
        ),
        cost_estimate=cost,
    )(pred, tgt2d)

    partials = out.reshape(num_chunks, 8, 128)[:, 0, 0]   # one scalar per chunk
    return jnp.sum(partials) / jnp.float32(N)


def _reference(pred, target, classes, smoothing):
    # pure-JAX reference mirroring the PyTorch module (weight=None, float smoothing)
    logp = jax.nn.log_softmax(pred.astype(jnp.float32), axis=-1)
    sv = smoothing / (classes - 1)
    conf = 1.0 - smoothing
    true_dist = jnp.full_like(logp, sv)
    true_dist = true_dist.at[jnp.arange(pred.shape[0]), target].set(conf)
    return jnp.mean(jnp.sum(-true_dist * logp, axis=-1))


if __name__ == "__main__":
    key = jax.random.PRNGKey(0)

    # --- test 1: small f32, single chunk, unaligned C (XLU-reduce path) ---
    N1, C1, sm1 = 8, 32, 0.1
    k1, k2, k3, k4 = jax.random.split(key, 4)
    pred1 = jax.random.normal(k1, (N1, C1), dtype=jnp.float32)
    tgt1 = jax.random.randint(k2, (N1,), 0, C1, dtype=jnp.int32)
    loss1 = jax.block_until_ready(
        label_smoothing_loss(pred1, tgt1, classes=C1, smoothing=sm1))
    ref1 = _reference(pred1, tgt1, C1, sm1)
    assert jnp.allclose(loss1, ref1, atol=1e-5, rtol=1e-5), (loss1, ref1)

    # --- test 2: bf16 logits, multiple parallel chunks, ragged last tile,
    # ---         lane-aligned C (MXU-reduce path) ---
    N2, C2, sm2 = 300, 128, 0.2
    pred2 = jax.random.normal(k3, (N2, C2), dtype=jnp.float32).astype(jnp.bfloat16)
    tgt2 = jax.random.randint(k4, (N2,), 0, C2, dtype=jnp.int32)
    loss2 = jax.block_until_ready(
        label_smoothing_loss(pred2, tgt2, classes=C2, smoothing=sm2, tile_rows=64))
    ref2 = _reference(pred2, tgt2, C2, sm2)
    assert jnp.allclose(loss2, ref2, atol=1e-4, rtol=1e-4), (loss2, ref2)

    # --- test 3: auto tile size on a medium f32 problem (>=2 chunks rule) ---
    N3, C3, sm3 = 144, 96, 0.05
    k5, k6 = jax.random.split(k4, 2)
    pred3 = jax.random.normal(k5, (N3, C3), dtype=jnp.float32)
    tgt3 = jax.random.randint(k6, (N3,), 0, C3, dtype=jnp.int32)
    loss3 = jax.block_until_ready(
        label_smoothing_loss(pred3, tgt3, classes=C3, smoothing=sm3))
    ref3 = _reference(pred3, tgt3, C3, sm3)
    assert jnp.allclose(loss3, ref3, atol=1e-5, rtol=1e-5), (loss3, ref3)

    print("KERNEL_OK")
</pallas_src>

<mosaic_0001>
module attributes {stable_mosaic.version = 11 : i64} {
  func.func @_label_smoothing_kernel(%arg0: i32, %arg1: memref<8x32xf32, #tpu.memory_space<vmem>>, %arg2: memref<8x1xi32, #tpu.memory_space<vmem>>, %arg3: memref<8x128xf32, #tpu.memory_space<vmem>>) attributes {dimension_semantics = [#tpu.dimension_semantics<parallel>], iteration_bounds = array<i64: 1>, scalar_prefetch = 0 : i64, scratch_operands = 0 : i64, tpu.core_type = #tpu.core_type<tc>, window_params = [{transform_indices = @transform_0, window_bounds = array<i64: 8, 32>}, {transform_indices = @transform_1, window_bounds = array<i64: 8, 1>}, {transform_indices = @transform_2, window_bounds = array<i64: 8, 128>}]} {
    %c0 = arith.constant 0 : index
    %c0_0 = arith.constant 0 : index
    %0 = vector.load %arg1[%c0, %c0_0] : memref<8x32xf32, #tpu.memory_space<vmem>>, vector<8x32xf32>
    %c0_1 = arith.constant 0 : index
    %c0_2 = arith.constant 0 : index
    %1 = vector.load %arg2[%c0_1, %c0_2] : memref<8x1xi32, #tpu.memory_space<vmem>>, vector<8x1xi32>
    %cst = arith.constant dense<0xFF800000> : vector<8xf32>
    %2 = vector.multi_reduction <maximumf>, %0, %cst [1] : vector<8x32xf32> to vector<8xf32>
    %3 = vector.shape_cast %2 : vector<8xf32> to vector<8x1xf32>
    %4 = vector.broadcast %3 : vector<8x1xf32> to vector<8x32xf32>
    %5 = arith.subf %0, %4 : vector<8x32xf32>
    %6 = math.exp %5 : vector<8x32xf32>
    %7 = tpu.iota {dimensions = array<i32: 1>} : vector<8x32xi32>
    %8 = vector.broadcast %1 : vector<8x1xi32> to vector<8x32xi32>
    %9 = arith.cmpi eq, %7, %8 : vector<8x32xi32>
    %cst_3 = arith.constant 0.899999976 : f32
    %cst_4 = arith.constant 0.0032258064 : f32
    %10 = vector.broadcast %cst_3 : f32 to vector<8x32xf32>
    %11 = vector.broadcast %cst_4 : f32 to vector<8x32xf32>
    %12 = arith.select %9, %10, %11 : vector<8x32xi1>, vector<8x32xf32>
    %13 = arith.mulf %12, %0 : vector<8x32xf32>
    %cst_5 = arith.constant dense<0.000000e+00> : vector<8xf32>
    %14 = vector.multi_reduction <add>, %6, %cst_5 [1] : vector<8x32xf32> to vector<8xf32>
    %15 = vector.shape_cast %14 : vector<8xf32> to vector<8x1xf32>
    %cst_6 = arith.constant dense<0.000000e+00> : vector<8xf32>
    %16 = vector.multi_reduction <add>, %13, %cst_6 [1] : vector<8x32xf32> to vector<8xf32>
    %17 = vector.shape_cast %16 : vector<8xf32> to vector<8x1xf32>
    %18 = math.log %15 : vector<8x1xf32>
    %19 = arith.addf %3, %18 : vector<8x1xf32>
    %20 = arith.subf %19, %17 : vector<8x1xf32>
    %21 = tpu.iota {dimensions = array<i32: 0>} : vector<8x1xi32>
    %c8_i32 = arith.constant 8 : i32
    %22 = arith.muli %arg0, %c8_i32 : i32
    %23 = vector.broadcast %22 : i32 to vector<8x1xi32>
    %24 = arith.addi %21, %23 : vector<8x1xi32>
    %c8_i32_7 = arith.constant 8 : i32
    %25 = vector.broadcast %c8_i32_7 : i32 to vector<8x1xi32>
    %26 = arith.cmpi slt, %24, %25 : vector<8x1xi32>
    %cst_8 = arith.constant 0.000000e+00 : f32
    %27 = vector.broadcast %cst_8 : f32 to vector<8x1xf32>
    %28 = arith.select %26, %20, %27 : vector<8x1xi1>, vector<8x1xf32>
    %29 = vector.shape_cast %28 : vector<8x1xf32> to vector<1x8x1xf32>
    %cst_9 = arith.constant dense<0.000000e+00> : vector<1xf32>
    %30 = vector.multi_reduction <add>, %29, %cst_9 [1, 2] : vector<1x8x1xf32> to vector<1xf32>
    %31 = vector.shape_cast %30 : vector<1xf32> to vector<1x1x1xf32>
    %32 = vector.extract %31[0, 0, 0] : f32 from vector<1x1x1xf32>
    %33 = vector.broadcast %32 : f32 to vector<8x128xf32>
    %c0_10 = arith.constant 0 : index
    %c0_11 = arith.constant 0 : index
    %34 = vector.load %arg3[%c0_10, %c0_11] : memref<8x128xf32, #tpu.memory_space<vmem>>, vector<8x128xf32>
    tpu.vector_store %arg3[%c0_10, %c0_11], %33 {strides = array<i32>} : memref<8x128xf32, #tpu.memory_space<vmem>>, vector<8x128xf32>,
    return
  }
  func.func @transform_0(%arg0: i32) -> (i32, i32) {
    %c0_i32 = arith.constant 0 : i32
    %c0_i32_0 = arith.constant 0 : i32
    return %arg0, %c0_i32 : i32, i32
  }
  func.func @transform_1(%arg0: i32) -> (i32, i32) {
    %c0_i32 = arith.constant 0 : i32
    %c0_i32_0 = arith.constant 0 : i32
    return %arg0, %c0_i32 : i32, i32
  }
  func.func @transform_2(%arg0: i32) -> (i32, i32) {
    %c0_i32 = arith.constant 0 : i32
    %c0_i32_0 = arith.constant 0 : i32
    return %arg0, %c0_i32 : i32, i32
  }
}

</mosaic_0001>

<llo_original>
// kernel: tpu_custom_call.1
$region0: #{tpu_custom_call.1}
  #allocation0 [shape = 'u32[]', space=smem, size = 0x4, offset = 0x4, fixed_abs, tag = 'smem constant byte address 0x4 - core index']
  #allocation1 [shape = 'u32[144,128]{1,0:T(1,128)}', space=vmem, size = 0x12000, scoped, tag = 'internal scratch']
  %s0 = inlined_call_operand.vmem [shape: f32[8,32], index: 0, kind: input, shape index: {}]
  %s1 = inlined_call_operand.vmem [shape: s32[8,1], index: 1, kind: input, shape index: {}]
  %s2 = inlined_call_operand.hbm [shape: f32[8,128], index: 2, kind: output, shape index: {}]
  %s3 = sld [smem:[#allocation0]]
  $region18: #{tpu_custom_call.1} parent=0
    _
  %s5 = ssub.s32 1, %s3
  %s6 = scalar_select 0, %s5, %s3
  $region1: #{tpu_custom_call.1} parent=0
    #allocation2 [shape = 'u8[4096]{0}', space=vmem, size = 0x1000, scoped, tag = 'output window, operand 0, single buffered']
    #allocation3 [shape = 's32[1]{0}', space=sflag, size = 0x4, scoped, tag = 'scoped memory for tpu_custom_call.1']
    %7 = vsyncpa [#allocation3], 0
    // Predicated region
    $region2: #{tpu_custom_call.1} parent=1 // pred_check
      _
    $region3: #{tpu_custom_call.1} parent=1 // pred_check_branch
      %9 = sbr.rel (0) target = $region5
    $region4: #{tpu_custom_call.1} parent=1 // pred_region
      _
    $region5: #{tpu_custom_call.1} parent=1 // pred_fallthru
      _
    // Predicated region
    $region6: #{tpu_custom_call.1} parent=1 // pred_check
      _
    $region7: #{tpu_custom_call.1} parent=1 // pred_check_branch
      %11 = sbr.rel (0) target = $region9
    $region8: #{tpu_custom_call.1} parent=1 // pred_region
      _
    $region9: #{tpu_custom_call.1} parent=1 // pred_fallthru
      _
    %v12 = vld [vmem:[%s0] sm:$0xff]
    %v13 = vld [vmem:[%s1] sm:$0xff]
    %vm14 = vcmask 261120
    %v15 = vsel %vm14, %v12, -inf
    %16 = vmax.xlane.f32.xlu0 %v15
    %v17 = vpop.xlane.xlu0 %16
    %v18 = vsub.f32 %v12, %v17
    %v19 = vmul.f32 %v18, 1.442695
    %v20 = vpow.pop %v19
    %v21 = vlaneseq
    %v22 = vand.u32 %v21, 127
    %23 = vset.pattern.permute.xlu0 0
    %24 = vperm.xlu0 %23, %v13
    %v25 = vpop.permute.xlu0 %24
    %vm26 = vcmp.eq.s32.totalorder %v22, %v25
    %v27 = vsel %vm26, 0.9, 0.0032258064
    %v28 = vmul.f32 %v27, %v12
    %v29 = vsel %vm14, %v20, 0.0
    %30 = vadd.xlane.f32.xlu0 %v29
    %v31 = vpop.xlane.xlu0 %30
    %v32 = vsel %vm14, %v28, 0.0
    %33 = vadd.xlane.f32.xlu0 %v32
    %v34 = vpop.xlane.xlu0 %33
    %v35 = vlog2.pop %v31
    %v36 = vmul.f32 %v35, 0.6931472
    %v37 = vadd.f32 %v17, %v36
    %v38 = vsub.f32 %v37, %v34
    %v39 = vlaneseq
    %v40 = vshrl.u32 %v39, 7
    %s41 = smul.u32 0, 8
    %v42 = vstv %s41
    %v43 = vadd.s32 %v40, %v42
    %vm44 = vcmp.lt.s32.totalorder %v43, 8
    %v45 = vsel %vm44, %v38, 0.0
    %vm46 = vcmask 7168
    %v47 = vsel %vm46, %v45, 0.0
    %48 = vadd.xlane.f32.xlu0 %v47
    %v49 = vpop.xlane.xlu0 %48
    %v50 = vrot.slane %v49, 4
    %v51 = vadd.f32 %v49, %v50
    %v52 = vrot.slane %v51, 2
    %v53 = vadd.f32 %v51, %v52
    %v54 = vrot.slane %v53, 1
    %v55 = vadd.f32 %v53, %v54
    %s56 = vtos %v55
    %v57 = vstv %s56
    %58 = vst [vmem:[#allocation2] sm:$0xff] %v57
    // Predicated region
    $region10: #{tpu_custom_call.1} parent=1 // pred_check
      _
    $region11: #{tpu_custom_call.1} parent=1 // pred_check_branch
      %60 = sbr.rel (0) target = $region13
    $region12: #{tpu_custom_call.1} parent=1 // pred_region
      %s62 = ssub.s32 128, 128
      %63 = vsyncadd [#allocation3], %s62
      %s65 = sshll.u32 [#allocation2], 4
      %s66 = int_to_ptr.vmem [resolvable:$true] %s65
      %68 = dma.vmem_to_hbm [thread:$0]  %s66, 128, %s2, [#allocation3]
    $region13: #{tpu_custom_call.1} parent=1 // pred_fallthru
      _
    // Predicated region
    $region14: #{tpu_custom_call.1} parent=1 // pred_check
      _
    $region15: #{tpu_custom_call.1} parent=1 // pred_check_branch
      %70 = sbr.rel (0) target = $region17
    $region16: #{tpu_custom_call.1} parent=1 // pred_region
      %71 = dma.done [#allocation3], 128
    $region17: #{tpu_custom_call.1} parent=1 // pred_fallthru
      _
    %72 = vsyncpa [#allocation3], 1

</llo_original>
